<compile_context>
chip_gen: v5e
topology: v5e:2x2
jax: 0.10.0
libtpu: 0.0.40
codegen_flags: <defaults>
</compile_context>

<pallas_src>
import jax
import jax.numpy as jnp
from jax.experimental import pallas as pl
from jax.experimental.pallas import tpu as pltpu


def _pick_num_chunks(leading: int, max_chunks: int = 4) -> int:
    """Largest chunk count <= max_chunks that evenly divides the leading dim."""
    for n in range(min(max_chunks, leading), 0, -1):
        if leading % n == 0:
            return n
    return 1


def _make_dma_copy_kernel(num_chunks: int, chunk_rows: int):
    """HBM->HBM identity copy: start all chunk DMAs, then wait on all."""

    def kernel(x_ref, o_ref, sem):
        copies = []
        for c in range(num_chunks):  # static Python loop -> unrolled at trace time
            cp = pltpu.make_async_copy(
                x_ref.at[pl.ds(c * chunk_rows, chunk_rows)],
                o_ref.at[pl.ds(c * chunk_rows, chunk_rows)],
                sem.at[c],
            )
            cp.start()
            copies.append(cp)
        for cp in copies:
            cp.wait()

    return kernel


def _pallas_squeeze_copy(x: jax.Array, out_shape: tuple[int, ...]) -> jax.Array:
    itemsize = jnp.dtype(x.dtype).itemsize
    total_bytes = x.size * itemsize

    # Metadata-only plumbing: present the input already in the squeezed shape
    # so source and destination DMA refs are shape-identical.  out_shape has
    # no size-1 dims by construction, so its leading dim is >= 2 (or the
    # array is rank-1 with length >= 2).
    x_sq = jnp.reshape(x, out_shape)

    leading = out_shape[0]
    num_chunks = _pick_num_chunks(leading)
    chunk_rows = leading // num_chunks

    out = pl.pallas_call(
        _make_dma_copy_kernel(num_chunks, chunk_rows),
        out_shape=jax.ShapeDtypeStruct(out_shape, x.dtype),
        # Raw HBM refs on both sides: the kernel moves bytes with the DMA
        # engine only, never touching VMEM or the VPU.
        in_specs=[pl.BlockSpec(memory_space=pl.ANY)],
        out_specs=pl.BlockSpec(memory_space=pl.ANY),
        scratch_shapes=[pltpu.SemaphoreType.DMA((num_chunks,))],
        cost_estimate=pl.CostEstimate(
            flops=0,
            transcendentals=0,
            bytes_accessed=2 * total_bytes,  # read + write, pure HBM streaming
        ),
    )(x_sq)
    return out


def flatten_squeeze(x: jax.Array, *, force_copy_kernel: bool = False) -> jax.Array:
    """Pallas equivalent of torch.Tensor.squeeze() (remove all size-1 dims)."""
    out_shape = tuple(d for d in x.shape if d != 1)

    if len(out_shape) == 0:
        # TODO(synk): 0-d output has no meaningful Pallas tile; metadata reshape.
        return jnp.reshape(x, ())

    # Fast path: squeezing unit dims of a contiguous array moves zero bytes —
    # let XLA do the metadata-only reshape instead of paying 2x tensor size of
    # HBM bandwidth.  The DMA copy kernel is used only when explicitly
    # requested (demo) or when a unit dim sits in the lane/sublane positions.
    unit_in_minor_dims = x.ndim >= 2 and any(d == 1 for d in x.shape[-2:])
    if not force_copy_kernel and not unit_in_minor_dims:
        return jnp.reshape(x, out_shape)

    return _pallas_squeeze_copy(x, out_shape)


if __name__ == "__main__":
    key = jax.random.PRNGKey(0)

    # NCHW input with a size-1 channel dim so squeeze() actually does something:
    # (2, 1, 16, 16) -> (2, 16, 16).
    x = jax.random.normal(key, (2, 1, 16, 16), dtype=jnp.float32)

    # Force the Pallas HBM->HBM DMA copy kernel so it actually executes on TPU.
    y = flatten_squeeze(x, force_copy_kernel=True)
    jax.block_until_ready(y)

    # Metadata-only fast path.
    y_fast = flatten_squeeze(x)
    jax.block_until_ready(y_fast)

    # A trailing unit dim (lane position) triggers the copy kernel naturally:
    # (2, 16, 16, 1) -> (2, 16, 16).
    x2 = jax.random.normal(jax.random.PRNGKey(1), (2, 16, 16, 1), dtype=jnp.float32)
    y2 = flatten_squeeze(x2)
    jax.block_until_ready(y2)

    # Reference checks against plain-JAX squeeze.
    ref = jnp.squeeze(x)
    assert y.shape == ref.shape, (y.shape, ref.shape)
    assert jnp.array_equal(y, ref)
    assert y_fast.shape == ref.shape
    assert jnp.array_equal(y_fast, ref)

    ref2 = jnp.squeeze(x2)
    assert y2.shape == ref2.shape, (y2.shape, ref2.shape)
    assert jnp.array_equal(y2, ref2)

    print("KERNEL_OK")
</pallas_src>

<mosaic_0001>
module attributes {stable_mosaic.version = 11 : i64} {
  func.func @kernel(%arg0: memref<2x16x16xf32, #tpu.memory_space<any>>, %arg1: memref<2x16x16xf32, #tpu.memory_space<any>>, %arg2: memref<2x!tpu.dma_semaphore, #tpu.memory_space<semaphore_mem>>) attributes {dimension_semantics = [], scalar_prefetch = 0 : i64, scratch_operands = 1 : i64, tpu.core_type = #tpu.core_type<tc>} {
    %c0_i32 = arith.constant 0 : i32
    %c0_i32_0 = arith.constant 0 : i32
    %c0_i32_1 = arith.constant 0 : i32
    %c0_i32_2 = arith.constant 0 : i32
    %0 = tpu.memref_slice %arg0[%c0_i32_0, %c0_i32_1, %c0_i32_2] : memref<2x16x16xf32, #tpu.memory_space<any>> -> memref<1x16x16xf32, #tpu.memory_space<any>>
    %c0_i32_3 = arith.constant 0 : i32
    %c0_i32_4 = arith.constant 0 : i32
    %c0_i32_5 = arith.constant 0 : i32
    %1 = tpu.memref_slice %arg1[%c0_i32_3, %c0_i32_4, %c0_i32_5] : memref<2x16x16xf32, #tpu.memory_space<any>> -> memref<1x16x16xf32, #tpu.memory_space<any>>
    %2 = tpu.memref_slice %arg2[%c0_i32] : memref<2x!tpu.dma_semaphore, #tpu.memory_space<semaphore_mem>> -> memref<1x!tpu.dma_semaphore, #tpu.memory_space<semaphore_mem>>
    %3 = tpu.memref_squeeze %2 : memref<1x!tpu.dma_semaphore, #tpu.memory_space<semaphore_mem>> -> memref<!tpu.dma_semaphore, #tpu.memory_space<semaphore_mem>>
    tpu.enqueue_dma source(%0 : memref<1x16x16xf32, #tpu.memory_space<any>>) target(%1 : memref<1x16x16xf32, #tpu.memory_space<any>>) target_semaphore(%3 : memref<!tpu.dma_semaphore, #tpu.memory_space<semaphore_mem>>)
    %c1_i32 = arith.constant 1 : i32
    %c1_i32_6 = arith.constant 1 : i32
    %c0_i32_7 = arith.constant 0 : i32
    %c0_i32_8 = arith.constant 0 : i32
    %4 = tpu.memref_slice %arg0[%c1_i32_6, %c0_i32_7, %c0_i32_8] : memref<2x16x16xf32, #tpu.memory_space<any>> -> memref<1x16x16xf32, #tpu.memory_space<any>>
    %c1_i32_9 = arith.constant 1 : i32
    %c0_i32_10 = arith.constant 0 : i32
    %c0_i32_11 = arith.constant 0 : i32
    %5 = tpu.memref_slice %arg1[%c1_i32_9, %c0_i32_10, %c0_i32_11] : memref<2x16x16xf32, #tpu.memory_space<any>> -> memref<1x16x16xf32, #tpu.memory_space<any>>
    %6 = tpu.memref_slice %arg2[%c1_i32] : memref<2x!tpu.dma_semaphore, #tpu.memory_space<semaphore_mem>> -> memref<1x!tpu.dma_semaphore, #tpu.memory_space<semaphore_mem>>
    %7 = tpu.memref_squeeze %6 : memref<1x!tpu.dma_semaphore, #tpu.memory_space<semaphore_mem>> -> memref<!tpu.dma_semaphore, #tpu.memory_space<semaphore_mem>>
    tpu.enqueue_dma source(%4 : memref<1x16x16xf32, #tpu.memory_space<any>>) target(%5 : memref<1x16x16xf32, #tpu.memory_space<any>>) target_semaphore(%7 : memref<!tpu.dma_semaphore, #tpu.memory_space<semaphore_mem>>)
    %c0_i32_12 = arith.constant 0 : i32
    %c0_i32_13 = arith.constant 0 : i32
    %c0_i32_14 = arith.constant 0 : i32
    %c0_i32_15 = arith.constant 0 : i32
    %8 = tpu.memref_slice %arg0[%c0_i32_13, %c0_i32_14, %c0_i32_15] : memref<2x16x16xf32, #tpu.memory_space<any>> -> memref<1x16x16xf32, #tpu.memory_space<any>>
    %c0_i32_16 = arith.constant 0 : i32
    %c0_i32_17 = arith.constant 0 : i32
    %c0_i32_18 = arith.constant 0 : i32
    %9 = tpu.memref_slice %arg1[%c0_i32_16, %c0_i32_17, %c0_i32_18] : memref<2x16x16xf32, #tpu.memory_space<any>> -> memref<1x16x16xf32, #tpu.memory_space<any>>
    %10 = tpu.memref_slice %arg2[%c0_i32_12] : memref<2x!tpu.dma_semaphore, #tpu.memory_space<semaphore_mem>> -> memref<1x!tpu.dma_semaphore, #tpu.memory_space<semaphore_mem>>
    %11 = tpu.memref_squeeze %10 : memref<1x!tpu.dma_semaphore, #tpu.memory_space<semaphore_mem>> -> memref<!tpu.dma_semaphore, #tpu.memory_space<semaphore_mem>>
    tpu.wait_dma2 semaphore(%11 : memref<!tpu.dma_semaphore, #tpu.memory_space<semaphore_mem>>) src(%8 : memref<1x16x16xf32, #tpu.memory_space<any>>) dst(%9 : memref<1x16x16xf32, #tpu.memory_space<any>>)
    %c1_i32_19 = arith.constant 1 : i32
    %c1_i32_20 = arith.constant 1 : i32
    %c0_i32_21 = arith.constant 0 : i32
    %c0_i32_22 = arith.constant 0 : i32
    %12 = tpu.memref_slice %arg0[%c1_i32_20, %c0_i32_21, %c0_i32_22] : memref<2x16x16xf32, #tpu.memory_space<any>> -> memref<1x16x16xf32, #tpu.memory_space<any>>
    %c1_i32_23 = arith.constant 1 : i32
    %c0_i32_24 = arith.constant 0 : i32
    %c0_i32_25 = arith.constant 0 : i32
    %13 = tpu.memref_slice %arg1[%c1_i32_23, %c0_i32_24, %c0_i32_25] : memref<2x16x16xf32, #tpu.memory_space<any>> -> memref<1x16x16xf32, #tpu.memory_space<any>>
    %14 = tpu.memref_slice %arg2[%c1_i32_19] : memref<2x!tpu.dma_semaphore, #tpu.memory_space<semaphore_mem>> -> memref<1x!tpu.dma_semaphore, #tpu.memory_space<semaphore_mem>>
    %15 = tpu.memref_squeeze %14 : memref<1x!tpu.dma_semaphore, #tpu.memory_space<semaphore_mem>> -> memref<!tpu.dma_semaphore, #tpu.memory_space<semaphore_mem>>
    tpu.wait_dma2 semaphore(%15 : memref<!tpu.dma_semaphore, #tpu.memory_space<semaphore_mem>>) src(%12 : memref<1x16x16xf32, #tpu.memory_space<any>>) dst(%13 : memref<1x16x16xf32, #tpu.memory_space<any>>)
    return
  }
}

</mosaic_0001>

<llo_original>
// kernel: tpu_custom_call.1
$region0: #{tpu_custom_call.1}
  #allocation0 [shape = 'u32[]', space=smem, size = 0x4, offset = 0x4, fixed_abs, tag = 'smem constant byte address 0x4 - core index']
  #allocation1 [shape = 'u32[72,128]{1,0:T(1,128)}', space=vmem, size = 0x9000, scoped, tag = 'internal scratch']
  #allocation2 [shape = 's32[2]{0}', space=sflag, size = 0x8, scoped, tag = 'scratch operand']
  #allocation3 [shape = 's32[]', space=sflag, size = 0x4, offset = 0, fixed_abs, tag = 'sflag constant byte address 0x0 - dummy sync flag']
  #allocation4 [shape = 'u32[0]{0}', space=smem, size = 0, offset = 0, fixed_abs, tag = 'smem constant byte address 0x0 - null']
  #allocation5 [shape = 's32[]', space=sflag, size = 0x4, offset = 0, fixed_abs, tag = 'sflag constant byte address 0x0 - dummy sync flag']
  #allocation6 [shape = 'u32[0]{0}', space=smem, size = 0, offset = 0, fixed_abs, tag = 'smem constant byte address 0x0 - null']
  %s0 = inlined_call_operand.hbm [shape: f32[2,16,16], index: 0, kind: input, shape index: {}]
  %s1 = inlined_call_operand.hbm [shape: f32[2,16,16], index: 1, kind: output, shape index: {}]
  %s2 = sld [smem:[#allocation0]]
  $region2: #{tpu_custom_call.1} parent=0
    _
  %s4 = ssub.s32 1, %s2
  %s5 = scalar_select 0, %s4, %s2
  %s7 = sshll.u32 1, 14
  %s8 = sxor.u32 4294967295, %s7
  %s10 = sshll.u32 %s0, 4
  %s11 = int_to_ptr.hbm [resolvable:$true] %s10
  %s12 = sshll.u32 %s1, 4
  %s13 = int_to_ptr.hbm [resolvable:$true] %s12
  %16 = dma.general %s11, 256, %s13, [#allocation2], [#allocation3], [#allocation4], 0, 0
  %s17 = scalar_lea.hbm %s0, 16
  %s18 = scalar_lea.hbm %s1, 16
  %s19 = scalar_lea.sflag [#allocation2], 1
  %s21 = sshll.u32 1, 14
  %s22 = sxor.u32 4294967295, %s21
  %s24 = sshll.u32 %s17, 4
  %s25 = int_to_ptr.hbm [resolvable:$true] %s24
  %s26 = sshll.u32 %s18, 4
  %s27 = int_to_ptr.hbm [resolvable:$true] %s26
  %30 = dma.general %s25, 256, %s27, %s19, [#allocation5], [#allocation6], 0, 0
  %s31 = smul.u32 1, 16
  %s32 = smul.u32 %s31, 1
  %s33 = sshll.u32 %s32, 4
  %34 = dma.done [#allocation2], %s33
  %s35 = sshll.u32 %s32, 4
  %36 = dma.done %s19, %s35
  %37 = vsyncmov [#allocation2]
  %s38 = vpop.sfrf %37
  %p39 = scmp.eq.s32.totalorder %s38, 0
  %p40 = pneg %p39
  %42 = shalt.err (%p40)
  %s43 = scalar_lea.sflag [#allocation2], 1
  %44 = vsyncmov %s43
  %s45 = vpop.sfrf %44
  %p46 = scmp.eq.s32.totalorder %s45, 0
  %p47 = pneg %p46
  %49 = shalt.err (%p47)

</llo_original>
